<compile_context>
chip_gen: v6e
topology: v6e:2x2x1
jax: 0.10.0
libtpu: 0.0.40
codegen_flags: <defaults>
</compile_context>

<pallas_src>
import jax
import jax.numpy as jnp
from jax.experimental import pallas as pl
from jax.experimental.pallas import tpu as pltpu

EPS = 1e-5  # boundary eps used by the reference PoincareDistance implementation


def _label_loss_kernel(e_ref, out_ref):
    """One batch tile: (N, D, TB) embeddings (batch on lanes) -> (1, TB) CE terms."""
    e = e_ref[...].astype(jnp.float32)                         # (N, D, TB)

    # --- 1) projection: e / (1 + sqrt(1 + ||e||^2)) -----------------------
    sq = jnp.sum(e * e, axis=1, keepdims=True)                 # (N, 1, TB) sublane sum
    inv_proj = pl.reciprocal(1.0 + jnp.sqrt(1.0 + sq), approx=False)
    e = e * inv_proj                                           # projected embeddings

    # post-projection squared norms: ||p*e||^2 = p^2 * ||e||^2 (saves a reduction)
    en = (sq * inv_proj * inv_proj)[:, 0, :]                   # (N, TB)

    # --- 2) direct ||s - o||^2 (numerically robust, no Gram cancellation) --
    s = e[0:1, :, :]                                           # (1, D, TB) anchor
    diff = e - s
    sqdist = jnp.sum(diff * diff, axis=1)                      # (N, TB)

    # --- 3) Poincaré distance, eps-clamped ---------------------------------
    sn = en[0:1, :]                                            # (1, TB)
    squ = jnp.clip(sn, 0.0, 1.0 - EPS)
    sqv = jnp.clip(en, 0.0, 1.0 - EPS)
    inv_denom = pl.reciprocal((1.0 - squ) * (1.0 - sqv), approx=False)  # (N, TB)
    x = 1.0 + 2.0 * sqdist * inv_denom
    z = jnp.sqrt(jnp.maximum(x * x - 1.0, 0.0))                # clamp: no NaN at x ~ 1
    dists = jnp.log(x + z)                                     # arcosh(x)

    # --- 4) cross entropy, target = first candidate (entity index 1) -------
    # Column 0 is anchor-vs-anchor (dist 0); mask it out of the log-sum-exp.
    logits = -dists                                            # (N, TB)
    row = jax.lax.broadcasted_iota(jnp.int32, logits.shape, 0)
    masked = jnp.where(row == 0, jnp.float32(-1e30), logits)
    m = jnp.max(masked, axis=0, keepdims=True)                 # (1, TB)
    lse = m + jnp.log(jnp.sum(jnp.exp(masked - m), axis=0, keepdims=True))
    out_ref[...] = lse - logits[1:2, :]                        # (1, TB) lane-dense store


def _round_up(x, m):
    return ((x + m - 1) // m) * m


def _vmem_plan():
    """Generation-aware VMEM limit & tile budget (v7x: 64 MiB/TC vs 128 MiB on v5e/v6e)."""
    vmem_bytes = None
    try:
        info = pltpu.get_tpu_info()
        vmem_bytes = getattr(info, "vmem_capacity_bytes", None)
    except Exception:
        vmem_bytes = None
    if not vmem_bytes:
        vmem_bytes = 64 * 1024 * 1024          # conservative fallback (v7x-sized VMEM)
    limit = min(int(vmem_bytes) * 3 // 4, 100 * 1024 * 1024)   # 48 MiB v7x / 96 MiB v5e,v6e
    budget = limit // 2                        # headroom for double-buffer + compiler scratch
    return limit, budget


def _pick_batch_tile(B, N, D, itemsize, vmem_budget_bytes):
    """Largest batch-lane tile whose *padded* double-buffered block + f32 temps fit."""
    d_pad = _round_up(D, 8)    # D sits on sublanes in the (N, D, TB) block
    n_pad = _round_up(N, 8)    # N sits on sublanes in the (N, TB) temps
    # Per padded batch-lane:
    #   2x double-buffered input block (input dtype)
    #   ~3 full-size f32 temps (e_f32, projected e, diff)
    #   ~8 small (N, TB) f32 temps (norms, logits, mask, exp, ...)
    per_lane = 2 * N * d_pad * itemsize + 3 * N * d_pad * 4 + 8 * n_pad * 4
    tb = vmem_budget_bytes // max(per_lane, 1)
    return int(max(128, tb))


def label_loss(e, tile_b=None):
    """e: (B, N, D) float array (f32 or bf16). Returns scalar float32 loss."""
    B, N, D = e.shape
    vmem_limit, vmem_budget = _vmem_plan()
    if tile_b is None:
        tile_b = _pick_batch_tile(B, N, D, jnp.dtype(e.dtype).itemsize, vmem_budget)

    if tile_b >= B:
        # Single tile spanning the whole batch (last block dim == full array dim).
        tile_b = B
        num_tiles = 1
        b_pad = B
    else:
        # Tiled lane axis must be a multiple of 128; pad the batch up to fill it.
        tile_b = max(128, (int(tile_b) // 128) * 128)
        num_tiles = -(-B // tile_b)
        b_pad = num_tiles * tile_b

    # Batch-on-lanes layout: (B, N, D) -> (N, D, B_pad).  Zero padding is safe: padded
    # lanes produce finite values that are sliced away before the mean below.
    e_t = jnp.transpose(e, (1, 2, 0))
    if b_pad != B:
        e_t = jnp.pad(e_t, ((0, 0), (0, 0), (0, b_pad - B)))

    per_row = pl.pallas_call(
        _label_loss_kernel,
        out_shape=jax.ShapeDtypeStruct((1, b_pad), jnp.float32),
        grid=(num_tiles,),
        in_specs=[pl.BlockSpec((N, D, tile_b), lambda b: (0, 0, b))],
        out_specs=pl.BlockSpec((1, tile_b), lambda b: (0, b)),
        compiler_params=pltpu.CompilerParams(
            dimension_semantics=("parallel",),     # shards the batch grid across v7x's 2 TCs
            vmem_limit_bytes=vmem_limit,
        ),
    )(e_t)

    # Drop the padded lanes, then mean over the real batch.
    return jnp.sum(per_row[0, :B]) / jnp.float32(B)


def _label_loss_ref(e):
    """Pure-JAX reference (mirrors the PyTorch forward)."""
    e = e.astype(jnp.float32)
    e = e / (1.0 + jnp.sqrt(1.0 + jnp.sum(e * e, axis=-1, keepdims=True)))
    s = e[:, 0:1, :]
    o = e[:, 1:, :]
    squ = jnp.clip(jnp.sum(s * s, -1), 0.0, 1.0 - EPS)
    sqv = jnp.clip(jnp.sum(o * o, -1), 0.0, 1.0 - EPS)
    sqd = jnp.sum((s - o) ** 2, -1)
    x = sqd / ((1.0 - squ) * (1.0 - sqv)) * 2.0 + 1.0
    dists = jnp.log(x + jnp.sqrt(x * x - 1.0))
    logits = -dists
    lse = jax.nn.logsumexp(logits, axis=-1)
    return jnp.mean(lse - logits[:, 0])


if __name__ == "__main__":
    # Deterministic example: batch=200, 9 entities (1 anchor + 8 candidates), dim 32.
    # tile_b=128 forces a 2-step grid with 56 zero-padded batch lanes (exercises the
    # pipelined + padded path); the auto-tiled call covers the single full-batch tile.
    B, N, D = 200, 9, 32
    key = jax.random.PRNGKey(0)
    e = jax.random.normal(key, (B, N, D), dtype=jnp.float32)

    ref = jax.block_until_ready(_label_loss_ref(e))

    loss_tiled = jax.block_until_ready(label_loss(e, tile_b=128))
    loss_auto = jax.block_until_ready(label_loss(e))

    assert jnp.isfinite(loss_tiled) and jnp.isfinite(loss_auto), "loss is not finite"
    assert jnp.allclose(loss_tiled, ref, rtol=1e-5, atol=1e-5), (loss_tiled, ref)
    assert jnp.allclose(loss_auto, ref, rtol=1e-5, atol=1e-5), (loss_auto, ref)

    # bf16 input path: half the HBM read traffic, f32 math inside the kernel.
    e_bf16 = e.astype(jnp.bfloat16)
    loss_bf16 = jax.block_until_ready(label_loss(e_bf16, tile_b=128))
    ref_bf16 = jax.block_until_ready(_label_loss_ref(e_bf16))
    assert jnp.allclose(loss_bf16, ref_bf16, rtol=1e-4, atol=1e-4), (loss_bf16, ref_bf16)

    print("KERNEL_OK")
</pallas_src>

<mosaic_0001>
module attributes {stable_mosaic.version = 11 : i64} {
  func.func @_label_loss_kernel(%arg0: i32, %arg1: memref<9x32x128xf32, #tpu.memory_space<vmem>>, %arg2: memref<1x128xf32, #tpu.memory_space<vmem>>) attributes {dimension_semantics = [#tpu.dimension_semantics<parallel>], iteration_bounds = array<i64: 2>, scalar_prefetch = 0 : i64, scratch_operands = 0 : i64, tpu.core_type = #tpu.core_type<tc>, window_params = [{transform_indices = @transform_0, window_bounds = array<i64: 9, 32, 128>}, {transform_indices = @transform_1, window_bounds = array<i64: 1, 128>}]} {
    %c0 = arith.constant 0 : index
    %c0_0 = arith.constant 0 : index
    %c0_1 = arith.constant 0 : index
    %0 = vector.load %arg1[%c0, %c0_0, %c0_1] : memref<9x32x128xf32, #tpu.memory_space<vmem>>, vector<9x32x128xf32>
    %1 = arith.mulf %0, %0 : vector<9x32x128xf32>
    %cst = arith.constant dense<0.000000e+00> : vector<9x128xf32>
    %2 = vector.multi_reduction <add>, %1, %cst [1] : vector<9x32x128xf32> to vector<9x128xf32>
    %3 = vector.shape_cast %2 : vector<9x128xf32> to vector<9x1x128xf32>
    %cst_2 = arith.constant 1.000000e+00 : f32
    %4 = vector.broadcast %cst_2 : f32 to vector<9x1x128xf32>
    %5 = arith.addf %4, %3 : vector<9x1x128xf32>
    %6 = math.sqrt %5 : vector<9x1x128xf32>
    %cst_3 = arith.constant 1.000000e+00 : f32
    %7 = vector.broadcast %cst_3 : f32 to vector<9x1x128xf32>
    %8 = arith.addf %7, %6 : vector<9x1x128xf32>
    %9 = tpu.reciprocal %8 : vector<9x1x128xf32> -> vector<9x1x128xf32>
    %10 = vector.broadcast %9 : vector<9x1x128xf32> to vector<9x32x128xf32>
    %11 = arith.mulf %0, %10 : vector<9x32x128xf32>
    %12 = arith.mulf %3, %9 : vector<9x1x128xf32>
    %13 = arith.mulf %12, %9 : vector<9x1x128xf32>
    %14 = vector.shape_cast %13 : vector<9x1x128xf32> to vector<9x128xf32>
    %15 = vector.extract_strided_slice %11 {offsets = [0, 0, 0], sizes = [1, 32, 128], strides = [1, 1, 1]} : vector<9x32x128xf32> to vector<1x32x128xf32>
    %16 = vector.broadcast %15 : vector<1x32x128xf32> to vector<9x32x128xf32>
    %17 = arith.subf %11, %16 : vector<9x32x128xf32>
    %18 = arith.mulf %17, %17 : vector<9x32x128xf32>
    %cst_4 = arith.constant dense<0.000000e+00> : vector<9x128xf32>
    %19 = vector.multi_reduction <add>, %18, %cst_4 [1] : vector<9x32x128xf32> to vector<9x128xf32>
    %20 = vector.extract_strided_slice %14 {offsets = [0, 0], sizes = [1, 128], strides = [1, 1]} : vector<9x128xf32> to vector<1x128xf32>
    %cst_5 = arith.constant 0.000000e+00 : f32
    %cst_6 = arith.constant 0.999989986 : f32
    %21 = vector.broadcast %cst_5 : f32 to vector<1x128xf32>
    %22 = arith.maximumf %21, %20 : vector<1x128xf32>
    %23 = vector.broadcast %cst_6 : f32 to vector<1x128xf32>
    %24 = arith.minimumf %23, %22 : vector<1x128xf32>
    %cst_7 = arith.constant 0.000000e+00 : f32
    %cst_8 = arith.constant 0.999989986 : f32
    %25 = vector.broadcast %cst_7 : f32 to vector<9x128xf32>
    %26 = arith.maximumf %25, %14 : vector<9x128xf32>
    %27 = vector.broadcast %cst_8 : f32 to vector<9x128xf32>
    %28 = arith.minimumf %27, %26 : vector<9x128xf32>
    %cst_9 = arith.constant 1.000000e+00 : f32
    %29 = vector.broadcast %cst_9 : f32 to vector<1x128xf32>
    %30 = arith.subf %29, %24 : vector<1x128xf32>
    %cst_10 = arith.constant 1.000000e+00 : f32
    %31 = vector.broadcast %cst_10 : f32 to vector<9x128xf32>
    %32 = arith.subf %31, %28 : vector<9x128xf32>
    %33 = vector.broadcast %30 : vector<1x128xf32> to vector<9x128xf32>
    %34 = arith.mulf %33, %32 : vector<9x128xf32>
    %35 = tpu.reciprocal %34 : vector<9x128xf32> -> vector<9x128xf32>
    %cst_11 = arith.constant 2.000000e+00 : f32
    %36 = vector.broadcast %cst_11 : f32 to vector<9x128xf32>
    %37 = arith.mulf %36, %19 : vector<9x128xf32>
    %38 = arith.mulf %37, %35 : vector<9x128xf32>
    %cst_12 = arith.constant 1.000000e+00 : f32
    %39 = vector.broadcast %cst_12 : f32 to vector<9x128xf32>
    %40 = arith.addf %39, %38 : vector<9x128xf32>
    %41 = arith.mulf %40, %40 : vector<9x128xf32>
    %cst_13 = arith.constant 1.000000e+00 : f32
    %42 = vector.broadcast %cst_13 : f32 to vector<9x128xf32>
    %43 = arith.subf %41, %42 : vector<9x128xf32>
    %cst_14 = arith.constant 0.000000e+00 : f32
    %44 = vector.broadcast %cst_14 : f32 to vector<9x128xf32>
    %45 = arith.maximumf %43, %44 : vector<9x128xf32>
    %46 = math.sqrt %45 : vector<9x128xf32>
    %47 = arith.addf %40, %46 : vector<9x128xf32>
    %48 = math.log %47 : vector<9x128xf32>
    %cst_15 = arith.constant 0.000000e+00 : f32
    %49 = vector.broadcast %cst_15 : f32 to vector<9x128xf32>
    %50 = arith.subf %49, %48 : vector<9x128xf32>
    %51 = tpu.iota {dimensions = array<i32: 0>} : vector<9x128xi32>
    %c0_i32 = arith.constant 0 : i32
    %52 = vector.broadcast %c0_i32 : i32 to vector<9x128xi32>
    %53 = arith.cmpi eq, %51, %52 : vector<9x128xi32>
    %cst_16 = arith.constant -1.000000e+30 : f32
    %54 = vector.broadcast %cst_16 : f32 to vector<9x128xf32>
    %55 = arith.select %53, %54, %50 : vector<9x128xi1>, vector<9x128xf32>
    %cst_17 = arith.constant dense<0xFF800000> : vector<128xf32>
    %56 = vector.multi_reduction <maximumf>, %55, %cst_17 [0] : vector<9x128xf32> to vector<128xf32>
    %57 = vector.shape_cast %56 : vector<128xf32> to vector<1x128xf32>
    %58 = vector.broadcast %57 : vector<1x128xf32> to vector<9x128xf32>
    %59 = arith.subf %55, %58 : vector<9x128xf32>
    %60 = math.exp %59 : vector<9x128xf32>
    %cst_18 = arith.constant dense<0.000000e+00> : vector<128xf32>
    %61 = vector.multi_reduction <add>, %60, %cst_18 [0] : vector<9x128xf32> to vector<128xf32>
    %62 = vector.shape_cast %61 : vector<128xf32> to vector<1x128xf32>
    %63 = math.log %62 : vector<1x128xf32>
    %64 = arith.addf %57, %63 : vector<1x128xf32>
    %65 = vector.extract_strided_slice %50 {offsets = [1, 0], sizes = [1, 128], strides = [1, 1]} : vector<9x128xf32> to vector<1x128xf32>
    %66 = arith.subf %64, %65 : vector<1x128xf32>
    %c0_19 = arith.constant 0 : index
    %c0_20 = arith.constant 0 : index
    %67 = vector.load %arg2[%c0_19, %c0_20] : memref<1x128xf32, #tpu.memory_space<vmem>>, vector<1x128xf32>
    tpu.vector_store %arg2[%c0_19, %c0_20], %66 {strides = array<i32>} : memref<1x128xf32, #tpu.memory_space<vmem>>, vector<1x128xf32>,
    return
  }
  func.func @transform_0(%arg0: i32) -> (i32, i32, i32) {
    %c0_i32 = arith.constant 0 : i32
    %c0_i32_0 = arith.constant 0 : i32
    %c0_i32_1 = arith.constant 0 : i32
    return %c0_i32, %c0_i32_0, %arg0 : i32, i32, i32
  }
  func.func @transform_1(%arg0: i32) -> (i32, i32) {
    %c0_i32 = arith.constant 0 : i32
    %c0_i32_0 = arith.constant 0 : i32
    return %c0_i32, %arg0 : i32, i32
  }
}

</mosaic_0001>

<llo_original>
// kernel: tpu_custom_call.1
$region0: #{tpu_custom_call.1}
  #allocation0 [shape = 'u32[]', space=smem, size = 0x4, offset = 0x4, fixed_abs, tag = 'smem constant byte address 0x4 - core index']
  #allocation1 [shape = 'u32[144,128]{1,0:T(1,128)}', space=vmem, size = 0x12000, scoped, tag = 'internal scratch']
  %s0 = inlined_call_operand.hbm [shape: f32[9,32,256], index: 0, kind: input, shape index: {}]
  %s1 = inlined_call_operand.hbm [shape: f32[1,256], index: 1, kind: output, shape index: {}]
  %s2 = sld [smem:[#allocation0]]
  $region41: #{tpu_custom_call.1} parent=0
    _
  %s4 = ssub.s32 1, %s2
  %s5 = scalar_select 0, %s4, %s2
  $region1: #{tpu_custom_call.1} parent=0
    #allocation2 [shape = 'u8[294912]{0}', space=vmem, size = 0x48000, scoped, tag = 'input window, operand 0']
    #allocation3 [shape = 's32[2]{0}', space=sflag, size = 0x8, scoped, tag = 'scoped memory for tpu_custom_call.1']
    #allocation4 [shape = 's32[2]{0}', space=sflag, size = 0x8, scoped, tag = 'scoped memory for tpu_custom_call.1']
    #allocation5 [shape = 'u8[1024]{0}', space=vmem, size = 0x400, scoped, tag = 'output window, operand 0']
    %6 = vsyncpa [#allocation3], 0
    %s7 = scalar_lea.sflag [#allocation3], 1
    %8 = vsyncpa %s7, 0
    %9 = vsyncpa [#allocation4], 0
    %s10 = scalar_lea.sflag [#allocation4], 1
    %11 = vsyncpa %s10, 0
    loop: start=0, step=1, limit=4
    $region2: #{tpu_custom_call.1} parent=1 // loop_pre_header
      _
    $region3: #{tpu_custom_call.1} parent=1 // loop_header
      %s13 = sphi 0, %s17
      %p14 = scmp.ge.s32.totalorder %s13, 4
      %s23 = sphi 0, %s25
      %s26 = sphi 0, %s23
      %s27 = sphi 0, %s26
      %s43 = sphi 0, %s27
      %s49 = sphi 0, %s51
      %s52 = sphi 0, %s49
      %s53 = sphi 0, %s52
      %s69 = sphi 0, %s53
    $region4: #{tpu_custom_call.1} parent=1 // loop_header_branch
      %16 = sbr.rel (%p14) target = $region8
    $region5: #{tpu_custom_call.1} parent=1 // loop_body
      %s18 = ssub.s32 %s13, 1
      %s19 = ssub.s32 %s13, 2
      %s20 = sadd.s32 %s13, 1
      %s21 = ssub.s32 %s13, %s20
      %p22 = scmp.eq.s32.totalorder %s21, 0
      %s24 = sadd.s32 %s23, 1
      %s25 = scalar_select %p22, %s23, %s24
      %p28 = pneg %p22
      %p29 = scmp.eq.s32.totalorder %s13, 1
      %p30 = por %p28, %p29
      %p31 = scmp.ne.s32.totalorder %s23, %s26
      %p32 = scmp.eq.s32.totalorder %s13, 0
      %p33 = por %p31, %p32
      %p34 = scmp.ne.s32.totalorder %s23, %s26
      %p35 = scmp.eq.s32.totalorder %s18, 1
      %p36 = por %p34, %p35
      %p37 = scmp.ne.s32.totalorder %s26, %s27
      %p38 = scmp.eq.s32.totalorder %s18, 0
      %p39 = por %p37, %p38
      %p40 = scmp.ne.s32.totalorder %s26, %s27
      %p41 = scmp.eq.s32.totalorder %s19, 1
      %p42 = por %p40, %p41
      %p44 = scmp.ne.s32.totalorder %s27, %s43
      %p45 = scmp.eq.s32.totalorder %s19, 0
      %p46 = por %p44, %p45
      %s47 = ssub.s32 %s13, %s20
      %p48 = scmp.eq.s32.totalorder %s47, 0
      %s50 = sadd.s32 %s49, 1
      %s51 = scalar_select %p48, %s49, %s50
      %p54 = pneg %p48
      %p55 = scmp.eq.s32.totalorder %s13, 1
      %p56 = por %p54, %p55
      %p57 = scmp.ne.s32.totalorder %s49, %s52
      %p58 = scmp.eq.s32.totalorder %s13, 0
      %p59 = por %p57, %p58
      %p60 = scmp.ne.s32.totalorder %s49, %s52
      %p61 = scmp.eq.s32.totalorder %s18, 1
      %p62 = por %p60, %p61
      %p63 = scmp.ne.s32.totalorder %s52, %s53
      %p64 = scmp.eq.s32.totalorder %s18, 0
      %p65 = por %p63, %p64
      %p66 = scmp.ne.s32.totalorder %s52, %s53
      %p67 = scmp.eq.s32.totalorder %s19, 1
      %p68 = por %p66, %p67
      %p70 = scmp.ne.s32.totalorder %s53, %s69
      %p71 = scmp.eq.s32.totalorder %s19, 0
      %p72 = por %p70, %p71
      %p73 = scmp.le.s32.totalorder 1, %s13
      %p74 = scmp.lt.s32.totalorder %s13, 3
      %p75 = pnand %p73, %p74
      %p76 = pneg %p75
      // Predicated region
      $region9: #{tpu_custom_call.1} parent=5 // pred_check
        _
      $region10: #{tpu_custom_call.1} parent=5 // pred_check_branch
        %78 = sbr.rel (%p75) target = $region12
      $region11: #{tpu_custom_call.1} parent=5 // pred_region
        %s79 = ssub.s32 %s13, 1
      $region12: #{tpu_custom_call.1} parent=5 // pred_fallthru
        _
      %p80 = scmp.lt.s32.totalorder %s13, 2
      // Predicated region
      $region13: #{tpu_custom_call.1} parent=5 // pred_check
        %p81 = pneg %p80
      $region14: #{tpu_custom_call.1} parent=5 // pred_check_branch
        %83 = sbr.rel (%p81) target = $region16
      $region15: #{tpu_custom_call.1} parent=5 // pred_region
        // Predicated region
        $region17: #{tpu_custom_call.1} parent=15 // pred_check
          %p84 = pneg %p33
        $region18: #{tpu_custom_call.1} parent=15 // pred_check_branch
          %86 = sbr.rel (%p84) target = $region20
        $region19: #{tpu_custom_call.1} parent=15 // pred_region
          %s87 = sand.u32 %s23, 1
          %s88 = scalar_lea.sflag [#allocation3], %s87
          %s89 = sand.u32 %s23, 1
          %s90 = smul.addr %s89, 288
          %s91 = scalar_lea.vmem [#allocation2], %s90
          %s93 = ssub.s32 4608, 4608
          %94 = vsyncadd %s88, %s93
          %s95 = smul.addr %s13, 128
          %s96 = scalar_lea.hbm %s0, %s95
          %s97 = sshll.u32 %s91, 4
          %s98 = int_to_ptr.vmem [resolvable:$true] %s97
          %103 = dma.hbm_to_vmem [thread:$0]  %s96, 4608, %s98, %s88, 256, 128, 8
        $region20: #{tpu_custom_call.1} parent=15 // pred_fallthru
          _
      $region16: #{tpu_custom_call.1} parent=5 // pred_fallthru
        _
      %p104 = scmp.le.s32.totalorder 1, %s13
      %p105 = scmp.lt.s32.totalorder %s13, 3
      %p106 = pnand %p104, %p105
      %p107 = pneg %p106
      // Predicated region
      $region21: #{tpu_custom_call.1} parent=5 // pred_check
        _
      $region22: #{tpu_custom_call.1} parent=5 // pred_check_branch
        %109 = sbr.rel (%p106) target = $region24
      $region23: #{tpu_custom_call.1} parent=5 // pred_region
        %s110 = ssub.s32 %s13, 1
        %s111 = sand.u32 %s26, 1
        %s112 = scalar_lea.sflag [#allocation3], %s111
        %s113 = sand.u32 %s26, 1
        %s114 = smul.addr %s113, 288
        %s115 = scalar_lea.vmem [#allocation2], %s114
        // Predicated region
        $region25: #{tpu_custom_call.1} parent=23 // pred_check
          %p116 = pneg %p39
        $region26: #{tpu_custom_call.1} parent=23 // pred_check_branch
          %118 = sbr.rel (%p116) target = $region28
        $region27: #{tpu_custom_call.1} parent=23 // pred_region
          %119 = dma.done %s112, 4608
        $region28: #{tpu_custom_call.1} parent=23 // pred_fallthru
          _
        %s120 = sand.u32 %s26, 1
        %s121 = scalar_lea.sflag [#allocation3], %s120
        %s122 = sand.u32 %s26, 1
        %s123 = smul.addr %s122, 288
        %s124 = scalar_lea.vmem [#allocation2], %s123
        %p125 = pneg %p39
        %p126 = pneg %p36
        %p127 = pneg %p65
        %p128 = pneg %p62
        %s129 = sand.u32 %s52, 1
        %s130 = scalar_lea.sflag [#allocation4], %s129
        %s131 = sand.u32 %s52, 1
        %s132 = scalar_lea.vmem [#allocation5], %s131
        %v133 = vld [vmem:[%s115] sm:$0xff]
        %v134 = vld [vmem:[%s115 + $0x8] sm:$0xff]
        %v135 = vld [vmem:[%s115 + $0x10] sm:$0xff]
        %v136 = vld [vmem:[%s115 + $0x18] sm:$0xff]
        %v137 = vld [vmem:[%s115 + $0x20] sm:$0xff]
        %v138 = vld [vmem:[%s115 + $0x28] sm:$0xff]
        %v139 = vld [vmem:[%s115 + $0x30] sm:$0xff]
        %v140 = vld [vmem:[%s115 + $0x38] sm:$0xff]
        %v141 = vld [vmem:[%s115 + $0x40] sm:$0xff]
        %v142 = vld [vmem:[%s115 + $0x48] sm:$0xff]
        %v143 = vld [vmem:[%s115 + $0x50] sm:$0xff]
        %v144 = vld [vmem:[%s115 + $0x58] sm:$0xff]
        %v145 = vld [vmem:[%s115 + $0x60] sm:$0xff]
        %v146 = vld [vmem:[%s115 + $0x68] sm:$0xff]
        %v147 = vld [vmem:[%s115 + $0x70] sm:$0xff]
        %v148 = vld [vmem:[%s115 + $0x78] sm:$0xff]
        %v149 = vld [vmem:[%s115 + $0x80] sm:$0xff]
        %v150 = vld [vmem:[%s115 + $0x88] sm:$0xff]
        %v151 = vld [vmem:[%s115 + $0x90] sm:$0xff]
        %v152 = vld [vmem:[%s115 + $0x98] sm:$0xff]
        %v153 = vld [vmem:[%s115 + $0xa0] sm:$0xff]
        %v154 = vld [vmem:[%s115 + $0xa8] sm:$0xff]
        %v155 = vld [vmem:[%s115 + $0xb0] sm:$0xff]
        %v156 = vld [vmem:[%s115 + $0xb8] sm:$0xff]
        %v157 = vld [vmem:[%s115 + $0xc0] sm:$0xff]
        %v158 = vld [vmem:[%s115 + $0xc8] sm:$0xff]
        %v159 = vld [vmem:[%s115 + $0xd0] sm:$0xff]
        %v160 = vld [vmem:[%s115 + $0xd8] sm:$0xff]
        %v161 = vld [vmem:[%s115 + $0xe0] sm:$0xff]
        %v162 = vld [vmem:[%s115 + $0xe8] sm:$0xff]
        %v163 = vld [vmem:[%s115 + $0xf0] sm:$0xff]
        %v164 = vld [vmem:[%s115 + $0xf8] sm:$0xff]
        %v165 = vld [vmem:[%s115 + $0x100] sm:$0xff]
        %v166 = vld [vmem:[%s115 + $0x108] sm:$0xff]
        %v167 = vld [vmem:[%s115 + $0x110] sm:$0xff]
        %v168 = vld [vmem:[%s115 + $0x118] sm:$0xff]
        %v169 = vmul.f32 %v133, %v133
        %v170 = vmul.f32 %v134, %v134
        %v171 = vmul.f32 %v135, %v135
        %v172 = vmul.f32 %v136, %v136
        %v173 = vmul.f32 %v137, %v137
        %v174 = vmul.f32 %v138, %v138
        %v175 = vmul.f32 %v139, %v139
        %v176 = vmul.f32 %v140, %v140
        %v177 = vmul.f32 %v141, %v141
        %v178 = vmul.f32 %v142, %v142
        %v179 = vmul.f32 %v143, %v143
        %v180 = vmul.f32 %v144, %v144
        %v181 = vmul.f32 %v145, %v145
        %v182 = vmul.f32 %v146, %v146
        %v183 = vmul.f32 %v147, %v147
        %v184 = vmul.f32 %v148, %v148
        %v185 = vmul.f32 %v149, %v149
        %v186 = vmul.f32 %v150, %v150
        %v187 = vmul.f32 %v151, %v151
        %v188 = vmul.f32 %v152, %v152
        %v189 = vmul.f32 %v153, %v153
        %v190 = vmul.f32 %v154, %v154
        %v191 = vmul.f32 %v155, %v155
        %v192 = vmul.f32 %v156, %v156
        %v193 = vmul.f32 %v157, %v157
        %v194 = vmul.f32 %v158, %v158
        %v195 = vmul.f32 %v159, %v159
        %v196 = vmul.f32 %v160, %v160
        %v197 = vmul.f32 %v161, %v161
        %v198 = vmul.f32 %v162, %v162
        %v199 = vmul.f32 %v163, %v163
        %v200 = vmul.f32 %v164, %v164
        %v201 = vmul.f32 %v165, %v165
        %v202 = vmul.f32 %v166, %v166
        %v203 = vmul.f32 %v167, %v167
        %v204 = vmul.f32 %v168, %v168
        %v205 = vadd.f32 %v169, %v170
        %v206 = vadd.f32 %v205, %v171
        %v207 = vadd.f32 %v206, %v172
        %v208 = vrot.slane %v207, 4
        %v209 = vadd.f32 %v207, %v208
        %v210 = vrot.slane %v209, 2
        %v211 = vadd.f32 %v209, %v210
        %v212 = vrot.slane %v211, 1
        %v213 = vadd.f32 %v211, %v212
        %v214 = vadd.f32 %v173, %v174
        %v215 = vadd.f32 %v214, %v175
        %v216 = vadd.f32 %v215, %v176
        %v217 = vrot.slane %v216, 4
        %v218 = vadd.f32 %v216, %v217
        %v219 = vrot.slane %v218, 2
        %v220 = vadd.f32 %v218, %v219
        %v221 = vrot.slane %v220, 1
        %v222 = vadd.f32 %v220, %v221
        %v223 = vadd.f32 %v177, %v178
        %v224 = vadd.f32 %v223, %v179
        %v225 = vadd.f32 %v224, %v180
        %v226 = vrot.slane %v225, 4
        %v227 = vadd.f32 %v225, %v226
        %v228 = vrot.slane %v227, 2
        %v229 = vadd.f32 %v227, %v228
        %v230 = vrot.slane %v229, 1
        %v231 = vadd.f32 %v229, %v230
        %v232 = vadd.f32 %v181, %v182
        %v233 = vadd.f32 %v232, %v183
        %v234 = vadd.f32 %v233, %v184
        %v235 = vrot.slane %v234, 4
        %v236 = vadd.f32 %v234, %v235
        %v237 = vrot.slane %v236, 2
        %v238 = vadd.f32 %v236, %v237
        %v239 = vrot.slane %v238, 1
        %v240 = vadd.f32 %v238, %v239
        %v241 = vadd.f32 %v185, %v186
        %v242 = vadd.f32 %v241, %v187
        %v243 = vadd.f32 %v242, %v188
        %v244 = vrot.slane %v243, 4
        %v245 = vadd.f32 %v243, %v244
        %v246 = vrot.slane %v245, 2
        %v247 = vadd.f32 %v245, %v246
        %v248 = vrot.slane %v247, 1
        %v249 = vadd.f32 %v247, %v248
        %v250 = vadd.f32 %v189, %v190
        %v251 = vadd.f32 %v250, %v191
        %v252 = vadd.f32 %v251, %v192
        %v253 = vrot.slane %v252, 4
        %v254 = vadd.f32 %v252, %v253
        %v255 = vrot.slane %v254, 2
        %v256 = vadd.f32 %v254, %v255
        %v257 = vrot.slane %v256, 1
        %v258 = vadd.f32 %v256, %v257
        %v259 = vadd.f32 %v193, %v194
        %v260 = vadd.f32 %v259, %v195
        %v261 = vadd.f32 %v260, %v196
        %v262 = vrot.slane %v261, 4
        %v263 = vadd.f32 %v261, %v262
        %v264 = vrot.slane %v263, 2
        %v265 = vadd.f32 %v263, %v264
        %v266 = vrot.slane %v265, 1
        %v267 = vadd.f32 %v265, %v266
        %v268 = vadd.f32 %v197, %v198
        %v269 = vadd.f32 %v268, %v199
        %v270 = vadd.f32 %v269, %v200
        %v271 = vrot.slane %v270, 4
        %v272 = vadd.f32 %v270, %v271
        %v273 = vrot.slane %v272, 2
        %v274 = vadd.f32 %v272, %v273
        %v275 = vrot.slane %v274, 1
        %v276 = vadd.f32 %v274, %v275
        %v277 = vadd.f32 %v201, %v202
        %v278 = vadd.f32 %v277, %v203
        %v279 = vadd.f32 %v278, %v204
        %v280 = vrot.slane %v279, 4
        %v281 = vadd.f32 %v279, %v280
        %v282 = vrot.slane %v281, 2
        %v283 = vadd.f32 %v281, %v282
        %v284 = vrot.slane %v283, 1
        %v285 = vadd.f32 %v283, %v284
        %v286 = vadd.f32 %v213, 1.0
        %v287 = vadd.f32 %v222, 1.0
        %v288 = vadd.f32 %v231, 1.0
        %v289 = vadd.f32 %v240, 1.0
        %v290 = vadd.f32 %v249, 1.0
        %v291 = vadd.f32 %v258, 1.0
        %v292 = vadd.f32 %v267, 1.0
        %v293 = vadd.f32 %v276, 1.0
        %v294 = vadd.f32 %v285, 1.0
        %v295 = vrsqrt.pop %v286
        %v296 = vmul.f32 %v286, %v295
        %vm297 = vcmp.eq.f32.partialorder %v286, inf
        %v298 = vsel %vm297, %v286, %v296
        %vm299 = vcmp.eq.f32.partialorder %v286, 0.0
        %v300 = vand.u32 %v286, 2147483648
        %v301 = vsel %vm299, %v300, %v298
        %v302 = vrsqrt.pop %v287
        %v303 = vmul.f32 %v287, %v302
        %vm304 = vcmp.eq.f32.partialorder %v287, inf
        %v305 = vsel %vm304, %v287, %v303
        %vm306 = vcmp.eq.f32.partialorder %v287, 0.0
        %v307 = vand.u32 %v287, 2147483648
        %v308 = vsel %vm306, %v307, %v305
        %v309 = vrsqrt.pop %v288
        %v310 = vmul.f32 %v288, %v309
        %vm311 = vcmp.eq.f32.partialorder %v288, inf
        %v312 = vsel %vm311, %v288, %v310
        %vm313 = vcmp.eq.f32.partialorder %v288, 0.0
        %v314 = vand.u32 %v288, 2147483648
        %v315 = vsel %vm313, %v314, %v312
        %v316 = vrsqrt.pop %v289
        %v317 = vmul.f32 %v289, %v316
        %vm318 = vcmp.eq.f32.partialorder %v289, inf
        %v319 = vsel %vm318, %v289, %v317
        %vm320 = vcmp.eq.f32.partialorder %v289, 0.0
        %v321 = vand.u32 %v289, 2147483648
        %v322 = vsel %vm320, %v321, %v319
        %v323 = vrsqrt.pop %v290
        %v324 = vmul.f32 %v290, %v323
        %vm325 = vcmp.eq.f32.partialorder %v290, inf
        %v326 = vsel %vm325, %v290, %v324
        %vm327 = vcmp.eq.f32.partialorder %v290, 0.0
        %v328 = vand.u32 %v290, 2147483648
        %v329 = vsel %vm327, %v328, %v326
        %v330 = vrsqrt.pop %v291
        %v331 = vmul.f32 %v291, %v330
        %vm332 = vcmp.eq.f32.partialorder %v291, inf
        %v333 = vsel %vm332, %v291, %v331
        %vm334 = vcmp.eq.f32.partialorder %v291, 0.0
        %v335 = vand.u32 %v291, 2147483648
        %v336 = vsel %vm334, %v335, %v333
        %v337 = vrsqrt.pop %v292
        %v338 = vmul.f32 %v292, %v337
        %vm339 = vcmp.eq.f32.partialorder %v292, inf
        %v340 = vsel %vm339, %v292, %v338
        %vm341 = vcmp.eq.f32.partialorder %v292, 0.0
        %v342 = vand.u32 %v292, 2147483648
        %v343 = vsel %vm341, %v342, %v340
        %v344 = vrsqrt.pop %v293
        %v345 = vmul.f32 %v293, %v344
        %vm346 = vcmp.eq.f32.partialorder %v293, inf
        %v347 = vsel %vm346, %v293, %v345
        %vm348 = vcmp.eq.f32.partialorder %v293, 0.0
        %v349 = vand.u32 %v293, 2147483648
        %v350 = vsel %vm348, %v349, %v347
        %v351 = vrsqrt.pop %v294
        %v352 = vmul.f32 %v294, %v351
        %vm353 = vcmp.eq.f32.partialorder %v294, inf
        %v354 = vsel %vm353, %v294, %v352
        %vm355 = vcmp.eq.f32.partialorder %v294, 0.0
        %v356 = vand.u32 %v294, 2147483648
        %v357 = vsel %vm355, %v356, %v354
        %v358 = vadd.f32 %v301, 1.0
        %v359 = vadd.f32 %v308, 1.0
        %v360 = vadd.f32 %v315, 1.0
        %v361 = vadd.f32 %v322, 1.0
        %v362 = vadd.f32 %v329, 1.0
        %v363 = vadd.f32 %v336, 1.0
        %v364 = vadd.f32 %v343, 1.0
        %v365 = vadd.f32 %v350, 1.0
        %v366 = vadd.f32 %v357, 1.0
        %v367 = vrcp.pop %v358
        %v368 = vrcp.pop %v359
        %v369 = vrcp.pop %v360
        %v370 = vrcp.pop %v361
        %v371 = vrcp.pop %v362
        %v372 = vrcp.pop %v363
        %v373 = vrcp.pop %v364
        %v374 = vrcp.pop %v365
        %v375 = vrcp.pop %v366
        %v376 = vmul.f32 %v133, %v367
        %v377 = vmul.f32 %v134, %v367
        %v378 = vmul.f32 %v135, %v367
        %v379 = vmul.f32 %v136, %v367
        %v380 = vmul.f32 %v137, %v368
        %v381 = vmul.f32 %v138, %v368
        %v382 = vmul.f32 %v139, %v368
        %v383 = vmul.f32 %v140, %v368
        %v384 = vmul.f32 %v141, %v369
        %v385 = vmul.f32 %v142, %v369
        %v386 = vmul.f32 %v143, %v369
        %v387 = vmul.f32 %v144, %v369
        %v388 = vmul.f32 %v145, %v370
        %v389 = vmul.f32 %v146, %v370
        %v390 = vmul.f32 %v147, %v370
        %v391 = vmul.f32 %v148, %v370
        %v392 = vmul.f32 %v149, %v371
        %v393 = vmul.f32 %v150, %v371
        %v394 = vmul.f32 %v151, %v371
        %v395 = vmul.f32 %v152, %v371
        %v396 = vmul.f32 %v153, %v372
        %v397 = vmul.f32 %v154, %v372
        %v398 = vmul.f32 %v155, %v372
        %v399 = vmul.f32 %v156, %v372
        %v400 = vmul.f32 %v157, %v373
        %v401 = vmul.f32 %v158, %v373
        %v402 = vmul.f32 %v159, %v373
        %v403 = vmul.f32 %v160, %v373
        %v404 = vmul.f32 %v161, %v374
        %v405 = vmul.f32 %v162, %v374
        %v406 = vmul.f32 %v163, %v374
        %v407 = vmul.f32 %v164, %v374
        %v408 = vmul.f32 %v165, %v375
        %v409 = vmul.f32 %v166, %v375
        %v410 = vmul.f32 %v167, %v375
        %v411 = vmul.f32 %v168, %v375
        %v412 = vmul.f32 %v213, %v367
        %v413 = vmul.f32 %v222, %v368
        %v414 = vmul.f32 %v231, %v369
        %v415 = vmul.f32 %v240, %v370
        %v416 = vmul.f32 %v249, %v371
        %v417 = vmul.f32 %v258, %v372
        %v418 = vmul.f32 %v267, %v373
        %v419 = vmul.f32 %v276, %v374
        %v420 = vmul.f32 %v285, %v375
        %v421 = vmul.f32 %v412, %v367
        %v422 = vmul.f32 %v413, %v368
        %v423 = vmul.f32 %v414, %v369
        %v424 = vmul.f32 %v415, %v370
        %v425 = vmul.f32 %v416, %v371
        %v426 = vmul.f32 %v417, %v372
        %v427 = vmul.f32 %v418, %v373
        %v428 = vmul.f32 %v419, %v374
        %v429 = vmul.f32 %v420, %v375
        %v430 = vsub.f32 %v376, %v376
        %v431 = vsub.f32 %v377, %v377
        %v432 = vsub.f32 %v378, %v378
        %v433 = vsub.f32 %v379, %v379
        %v434 = vsub.f32 %v380, %v376
        %v435 = vsub.f32 %v381, %v377
        %v436 = vsub.f32 %v382, %v378
        %v437 = vsub.f32 %v383, %v379
        %v438 = vsub.f32 %v384, %v376
        %v439 = vsub.f32 %v385, %v377
        %v440 = vsub.f32 %v386, %v378
        %v441 = vsub.f32 %v387, %v379
        %v442 = vsub.f32 %v388, %v376
        %v443 = vsub.f32 %v389, %v377
        %v444 = vsub.f32 %v390, %v378
        %v445 = vsub.f32 %v391, %v379
        %v446 = vsub.f32 %v392, %v376
        %v447 = vsub.f32 %v393, %v377
        %v448 = vsub.f32 %v394, %v378
        %v449 = vsub.f32 %v395, %v379
        %v450 = vsub.f32 %v396, %v376
        %v451 = vsub.f32 %v397, %v377
        %v452 = vsub.f32 %v398, %v378
        %v453 = vsub.f32 %v399, %v379
        %v454 = vsub.f32 %v400, %v376
        %v455 = vsub.f32 %v401, %v377
        %v456 = vsub.f32 %v402, %v378
        %v457 = vsub.f32 %v403, %v379
        %v458 = vsub.f32 %v404, %v376
        %v459 = vsub.f32 %v405, %v377
        %v460 = vsub.f32 %v406, %v378
        %v461 = vsub.f32 %v407, %v379
        %v462 = vsub.f32 %v408, %v376
        %v463 = vsub.f32 %v409, %v377
        %v464 = vsub.f32 %v410, %v378
        %v465 = vsub.f32 %v411, %v379
        %v466 = vmul.f32 %v430, %v430
        %v467 = vmul.f32 %v431, %v431
        %v468 = vmul.f32 %v432, %v432
        %v469 = vmul.f32 %v433, %v433
        %v470 = vmul.f32 %v434, %v434
        %v471 = vmul.f32 %v435, %v435
        %v472 = vmul.f32 %v436, %v436
        %v473 = vmul.f32 %v437, %v437
        %v474 = vmul.f32 %v438, %v438
        %v475 = vmul.f32 %v439, %v439
        %v476 = vmul.f32 %v440, %v440
        %v477 = vmul.f32 %v441, %v441
        %v478 = vmul.f32 %v442, %v442
        %v479 = vmul.f32 %v443, %v443
        %v480 = vmul.f32 %v444, %v444
        %v481 = vmul.f32 %v445, %v445
        %v482 = vmul.f32 %v446, %v446
        %v483 = vmul.f32 %v447, %v447
        %v484 = vmul.f32 %v448, %v448
        %v485 = vmul.f32 %v449, %v449
        %v486 = vmul.f32 %v450, %v450
        %v487 = vmul.f32 %v451, %v451
        %v488 = vmul.f32 %v452, %v452
        %v489 = vmul.f32 %v453, %v453
        %v490 = vmul.f32 %v454, %v454
        %v491 = vmul.f32 %v455, %v455
        %v492 = vmul.f32 %v456, %v456
        %v493 = vmul.f32 %v457, %v457
        %v494 = vmul.f32 %v458, %v458
        %v495 = vmul.f32 %v459, %v459
        %v496 = vmul.f32 %v460, %v460
        %v497 = vmul.f32 %v461, %v461
        %v498 = vmul.f32 %v462, %v462
        %v499 = vmul.f32 %v463, %v463
        %v500 = vmul.f32 %v464, %v464
        %v501 = vmul.f32 %v465, %v465
        %v502 = vadd.f32 %v466, %v467
        %v503 = vadd.f32 %v502, %v468
        %v504 = vadd.f32 %v503, %v469
        %v505 = vrot.slane %v504, 4
        %v506 = vadd.f32 %v504, %v505
        %v507 = vrot.slane %v506, 2
        %v508 = vadd.f32 %v506, %v507
        %v509 = vrot.slane %v508, 1
        %v510 = vadd.f32 %v508, %v509
        %v511 = vadd.f32 %v470, %v471
        %v512 = vadd.f32 %v511, %v472
        %v513 = vadd.f32 %v512, %v473
        %v514 = vrot.slane %v513, 4
        %v515 = vadd.f32 %v513, %v514
        %v516 = vrot.slane %v515, 2
        %v517 = vadd.f32 %v515, %v516
        %v518 = vrot.slane %v517, 1
        %v519 = vadd.f32 %v517, %v518
        %v520 = vadd.f32 %v474, %v475
        %v521 = vadd.f32 %v520, %v476
        %v522 = vadd.f32 %v521, %v477
        %v523 = vrot.slane %v522, 4
        %v524 = vadd.f32 %v522, %v523
        %v525 = vrot.slane %v524, 2
        %v526 = vadd.f32 %v524, %v525
        %v527 = vrot.slane %v526, 1
        %v528 = vadd.f32 %v526, %v527
        %v529 = vadd.f32 %v478, %v479
        %v530 = vadd.f32 %v529, %v480
        %v531 = vadd.f32 %v530, %v481
        %v532 = vrot.slane %v531, 4
        %v533 = vadd.f32 %v531, %v532
        %v534 = vrot.slane %v533, 2
        %v535 = vadd.f32 %v533, %v534
        %v536 = vrot.slane %v535, 1
        %v537 = vadd.f32 %v535, %v536
        %v538 = vadd.f32 %v482, %v483
        %v539 = vadd.f32 %v538, %v484
        %v540 = vadd.f32 %v539, %v485
        %v541 = vrot.slane %v540, 4
        %v542 = vadd.f32 %v540, %v541
        %v543 = vrot.slane %v542, 2
        %v544 = vadd.f32 %v542, %v543
        %v545 = vrot.slane %v544, 1
        %v546 = vadd.f32 %v544, %v545
        %v547 = vadd.f32 %v486, %v487
        %v548 = vadd.f32 %v547, %v488
        %v549 = vadd.f32 %v548, %v489
        %v550 = vrot.slane %v549, 4
        %v551 = vadd.f32 %v549, %v550
        %v552 = vrot.slane %v551, 2
        %v553 = vadd.f32 %v551, %v552
        %v554 = vrot.slane %v553, 1
        %v555 = vadd.f32 %v553, %v554
        %v556 = vadd.f32 %v490, %v491
        %v557 = vadd.f32 %v556, %v492
        %v558 = vadd.f32 %v557, %v493
        %v559 = vrot.slane %v558, 4
        %v560 = vadd.f32 %v558, %v559
        %v561 = vrot.slane %v560, 2
        %v562 = vadd.f32 %v560, %v561
        %v563 = vrot.slane %v562, 1
        %v564 = vadd.f32 %v562, %v563
        %v565 = vadd.f32 %v494, %v495
        %v566 = vadd.f32 %v565, %v496
        %v567 = vadd.f32 %v566, %v497
        %v568 = vrot.slane %v567, 4
        %v569 = vadd.f32 %v567, %v568
        %v570 = vrot.slane %v569, 2
        %v571 = vadd.f32 %v569, %v570
        %v572 = vrot.slane %v571, 1
        %v573 = vadd.f32 %v571, %v572
        %v574 = vadd.f32 %v498, %v499
        %v575 = vadd.f32 %v574, %v500
        %v576 = vadd.f32 %v575, %v501
        %v577 = vrot.slane %v576, 4
        %v578 = vadd.f32 %v576, %v577
        %v579 = vrot.slane %v578, 2
        %v580 = vadd.f32 %v578, %v579
        %v581 = vrot.slane %v580, 1
        %v582 = vadd.f32 %v580, %v581
        %v583 = vmax.f32 %v421, 0.0
        %v584 = vmin.f32 %v583, 0.99999
        %v585 = vmax.f32 %v422, 0.0
        %v586 = vmax.f32 %v423, 0.0
        %v587 = vmax.f32 %v424, 0.0
        %v588 = vmax.f32 %v425, 0.0
        %v589 = vmax.f32 %v426, 0.0
        %v590 = vmax.f32 %v427, 0.0
        %v591 = vmax.f32 %v428, 0.0
        %v592 = vmax.f32 %v429, 0.0
        %v593 = vmin.f32 %v585, 0.99999
        %v594 = vmin.f32 %v586, 0.99999
        %v595 = vmin.f32 %v587, 0.99999
        %v596 = vmin.f32 %v588, 0.99999
        %v597 = vmin.f32 %v589, 0.99999
        %v598 = vmin.f32 %v590, 0.99999
        %v599 = vmin.f32 %v591, 0.99999
        %v600 = vmin.f32 %v592, 0.99999
        %v601 = vsub.f32 1.0, %v584
        %v602 = vsub.f32 1.0, %v593
        %v603 = vsub.f32 1.0, %v594
        %v604 = vsub.f32 1.0, %v595
        %v605 = vsub.f32 1.0, %v596
        %v606 = vsub.f32 1.0, %v597
        %v607 = vsub.f32 1.0, %v598
        %v608 = vsub.f32 1.0, %v599
        %v609 = vsub.f32 1.0, %v600
        %vm619 = vcmask 1041409
        %v620 = vsel %vm619, %v602, %v601
        %vm621 = vcmask 1042434
        %v622 = vsel %vm621, %v603, %v620
        %vm623 = vcmask 1043459
        %v624 = vsel %vm623, %v604, %v622
        %vm625 = vcmask 1044484
        %v626 = vsel %vm625, %v605, %v624
        %vm627 = vcmask 1045509
        %v628 = vsel %vm627, %v606, %v626
        %vm629 = vcmask 1046534
        %v630 = vsel %vm629, %v607, %v628
        %vm631 = vcmask 1047559
        %v632 = vsel %vm631, %v608, %v630
        %v635 = vmul.f32 %v601, %v632
        %v636 = vmul.f32 %v601, %v609
        %v637 = vrcp.pop %v635
        %v638 = vrcp.pop %v636
        %v639 = vmul.f32 %v510, 2.0
        %v640 = vmul.f32 %v519, 2.0
        %v641 = vmul.f32 %v528, 2.0
        %v642 = vmul.f32 %v537, 2.0
        %v643 = vmul.f32 %v546, 2.0
        %v644 = vmul.f32 %v555, 2.0
        %v645 = vmul.f32 %v564, 2.0
        %v646 = vmul.f32 %v573, 2.0
        %v647 = vmul.f32 %v582, 2.0
        %v650 = vrot.slane %v637, 1
        %v651 = vrot.slane %v637, 2
        %v652 = vrot.slane %v637, 3
        %v653 = vrot.slane %v637, 4
        %v654 = vrot.slane %v637, 5
        %v655 = vrot.slane %v637, 6
        %v656 = vrot.slane %v637, 7
        %v666 = vmul.f32 %v639, %v637
        %v667 = vmul.f32 %v640, %v650
        %v668 = vmul.f32 %v641, %v651
        %v669 = vmul.f32 %v642, %v652
        %v670 = vmul.f32 %v643, %v653
        %v671 = vmul.f32 %v644, %v654
        %v672 = vmul.f32 %v645, %v655
        %v673 = vmul.f32 %v646, %v656
        %v674 = vmul.f32 %v647, %v638
        %v675 = vadd.f32 %v666, 1.0
        %v676 = vadd.f32 %v667, 1.0
        %v677 = vadd.f32 %v668, 1.0
        %v678 = vadd.f32 %v669, 1.0
        %v679 = vadd.f32 %v670, 1.0
        %v680 = vadd.f32 %v671, 1.0
        %v681 = vadd.f32 %v672, 1.0
        %v682 = vadd.f32 %v673, 1.0
        %v683 = vadd.f32 %v674, 1.0
        %v684 = vmul.f32 %v675, %v675
        %v685 = vmul.f32 %v676, %v676
        %v686 = vmul.f32 %v677, %v677
        %v687 = vmul.f32 %v678, %v678
        %v688 = vmul.f32 %v679, %v679
        %v689 = vmul.f32 %v680, %v680
        %v690 = vmul.f32 %v681, %v681
        %v691 = vmul.f32 %v682, %v682
        %v692 = vmul.f32 %v683, %v683
        %v693 = vsub.f32 %v684, 1.0
        %v694 = vsub.f32 %v685, 1.0
        %v695 = vsub.f32 %v686, 1.0
        %v696 = vsub.f32 %v687, 1.0
        %v697 = vsub.f32 %v688, 1.0
        %v698 = vsub.f32 %v689, 1.0
        %v699 = vsub.f32 %v690, 1.0
        %v700 = vsub.f32 %v691, 1.0
        %v701 = vsub.f32 %v692, 1.0
        %v702 = vmax.f32 %v693, 0.0
        %v703 = vmax.f32 %v694, 0.0
        %v704 = vmax.f32 %v695, 0.0
        %v705 = vmax.f32 %v696, 0.0
        %v706 = vmax.f32 %v697, 0.0
        %v707 = vmax.f32 %v698, 0.0
        %v708 = vmax.f32 %v699, 0.0
        %v709 = vmax.f32 %v700, 0.0
        %v710 = vmax.f32 %v701, 0.0
        %v711 = vrsqrt.pop %v702
        %v712 = vmul.f32 %v702, %v711
        %vm713 = vcmp.eq.f32.partialorder %v702, inf
        %v714 = vsel %vm713, %v702, %v712
        %vm715 = vcmp.eq.f32.partialorder %v702, 0.0
        %v716 = vand.u32 %v702, 2147483648
        %v717 = vsel %vm715, %v716, %v714
        %v718 = vrsqrt.pop %v703
        %v719 = vmul.f32 %v703, %v718
        %vm720 = vcmp.eq.f32.partialorder %v703, inf
        %v721 = vsel %vm720, %v703, %v719
        %vm722 = vcmp.eq.f32.partialorder %v703, 0.0
        %v723 = vand.u32 %v703, 2147483648
        %v724 = vsel %vm722, %v723, %v721
        %v725 = vrsqrt.pop %v704
        %v726 = vmul.f32 %v704, %v725
        %vm727 = vcmp.eq.f32.partialorder %v704, inf
        %v728 = vsel %vm727, %v704, %v726
        %vm729 = vcmp.eq.f32.partialorder %v704, 0.0
        %v730 = vand.u32 %v704, 2147483648
        %v731 = vsel %vm729, %v730, %v728
        %v732 = vrsqrt.pop %v705
        %v733 = vmul.f32 %v705, %v732
        %vm734 = vcmp.eq.f32.partialorder %v705, inf
        %v735 = vsel %vm734, %v705, %v733
        %vm736 = vcmp.eq.f32.partialorder %v705, 0.0
        %v737 = vand.u32 %v705, 2147483648
        %v738 = vsel %vm736, %v737, %v735
        %v739 = vrsqrt.pop %v706
        %v740 = vmul.f32 %v706, %v739
        %vm741 = vcmp.eq.f32.partialorder %v706, inf
        %v742 = vsel %vm741, %v706, %v740
        %vm743 = vcmp.eq.f32.partialorder %v706, 0.0
        %v744 = vand.u32 %v706, 2147483648
        %v745 = vsel %vm743, %v744, %v742
        %v746 = vrsqrt.pop %v707
        %v747 = vmul.f32 %v707, %v746
        %vm748 = vcmp.eq.f32.partialorder %v707, inf
        %v749 = vsel %vm748, %v707, %v747
        %vm750 = vcmp.eq.f32.partialorder %v707, 0.0
        %v751 = vand.u32 %v707, 2147483648
        %v752 = vsel %vm750, %v751, %v749
        %v753 = vrsqrt.pop %v708
        %v754 = vmul.f32 %v708, %v753
        %vm755 = vcmp.eq.f32.partialorder %v708, inf
        %v756 = vsel %vm755, %v708, %v754
        %vm757 = vcmp.eq.f32.partialorder %v708, 0.0
        %v758 = vand.u32 %v708, 2147483648
        %v759 = vsel %vm757, %v758, %v756
        %v760 = vrsqrt.pop %v709
        %v761 = vmul.f32 %v709, %v760
        %vm762 = vcmp.eq.f32.partialorder %v709, inf
        %v763 = vsel %vm762, %v709, %v761
        %vm764 = vcmp.eq.f32.partialorder %v709, 0.0
        %v765 = vand.u32 %v709, 2147483648
        %v766 = vsel %vm764, %v765, %v763
        %v767 = vrsqrt.pop %v710
        %v768 = vmul.f32 %v710, %v767
        %vm769 = vcmp.eq.f32.partialorder %v710, inf
        %v770 = vsel %vm769, %v710, %v768
        %vm771 = vcmp.eq.f32.partialorder %v710, 0.0
        %v772 = vand.u32 %v710, 2147483648
        %v773 = vsel %vm771, %v772, %v770
        %v774 = vadd.f32 %v675, %v717
        %v775 = vadd.f32 %v676, %v724
        %v776 = vadd.f32 %v677, %v731
        %v777 = vadd.f32 %v678, %v738
        %v778 = vadd.f32 %v679, %v745
        %v779 = vadd.f32 %v680, %v752
        %v780 = vadd.f32 %v681, %v759
        %v781 = vadd.f32 %v682, %v766
        %v782 = vadd.f32 %v683, %v773
        %v783 = vlog2.pop %v774
        %v784 = vmul.f32 %v783, 0.6931472
        %v785 = vlog2.pop %v775
        %v786 = vmul.f32 %v785, 0.6931472
        %v787 = vlog2.pop %v776
        %v788 = vmul.f32 %v787, 0.6931472
        %v789 = vlog2.pop %v777
        %v790 = vmul.f32 %v789, 0.6931472
        %v791 = vlog2.pop %v778
        %v792 = vmul.f32 %v791, 0.6931472
        %v793 = vlog2.pop %v779
        %v794 = vmul.f32 %v793, 0.6931472
        %v795 = vlog2.pop %v780
        %v796 = vmul.f32 %v795, 0.6931472
        %v797 = vlog2.pop %v781
        %v798 = vmul.f32 %v797, 0.6931472
        %v799 = vlog2.pop %v782
        %v800 = vmul.f32 %v799, 0.6931472
        %v801 = vsub.f32 0.0, %v784
        %v802 = vsub.f32 0.0, %v786
        %v803 = vsub.f32 0.0, %v788
        %v804 = vsub.f32 0.0, %v790
        %v805 = vsub.f32 0.0, %v792
        %v806 = vsub.f32 0.0, %v794
        %v807 = vsub.f32 0.0, %v796
        %v808 = vsub.f32 0.0, %v798
        %v809 = vsub.f32 0.0, %v800
        %v810 = vlaneseq
        %v811 = vshrl.u32 %v810, 7
        %v812 = vadd.s32 %v811, 8
        %vm813 = vcmp.eq.s32.totalorder %v811, 0
        %vm814 = vcmp.eq.s32.totalorder %v812, 0
        %v824 = vrot.slane %v802, 7
        %v825 = vsel %vm619, %v824, %v801
        %v826 = vrot.slane %v803, 6
        %v827 = vsel %vm621, %v826, %v825
        %v828 = vrot.slane %v804, 5
        %v829 = vsel %vm623, %v828, %v827
        %v830 = vrot.slane %v805, 4
        %v831 = vsel %vm625, %v830, %v829
        %v832 = vrot.slane %v806, 3
        %v833 = vsel %vm627, %v832, %v831
        %v834 = vrot.slane %v807, 2
        %v835 = vsel %vm629, %v834, %v833
        %v836 = vrot.slane %v808, 1
        %v837 = vsel %vm631, %v836, %v835
        %v840 = vsel %vm813, -1e+30, %v837
        %v841 = vsel %vm814, -1e+30, %v809
        %vm842 = vcmask 1040384
        %v843 = vsel %vm842, %v841, -inf
        %v844 = vmax.f32 %v840, %v843
        %v845 = vrot.slane %v844, 4
        %v846 = vmax.f32 %v844, %v845
        %v847 = vrot.slane %v846, 2
        %v848 = vmax.f32 %v846, %v847
        %v849 = vrot.slane %v848, 1
        %v850 = vmax.f32 %v848, %v849
        %v851 = vsub.f32 %v840, %v850
        %v852 = vsub.f32 %v841, %v850
        %v853 = vmul.f32 %v851, 1.442695
        %v854 = vpow.pop %v853
        %v855 = vmul.f32 %v852, 1.442695
        %v856 = vpow.pop %v855
        %v857 = vsel %vm842, %v856, 0.0
        %v858 = vadd.f32 %v854, %v857
        %v859 = vrot.slane %v858, 4
        %v860 = vadd.f32 %v858, %v859
        %v861 = vrot.slane %v860, 2
        %v862 = vadd.f32 %v860, %v861
        %v863 = vrot.slane %v862, 1
        %v864 = vadd.f32 %v862, %v863
        %v865 = vlog2.pop %v864
        %v866 = vmul.f32 %v865, 0.6931472
        %v867 = vadd.f32 %v850, %v866
        %v868 = vsub.f32 %v867, %v802
        %869 = vst [vmem:[%s132] sm:$0x1] %v868
        %s870 = sand.u32 %s52, 1
        %s871 = scalar_lea.sflag [#allocation4], %s870
        %s872 = sand.u32 %s52, 1
        %s873 = scalar_lea.vmem [#allocation5], %s872
        // Predicated region
        $region29: #{tpu_custom_call.1} parent=23 // pred_check
          %p874 = pneg %p62
        $region30: #{tpu_custom_call.1} parent=23 // pred_check_branch
          %876 = sbr.rel (%p874) target = $region32
        $region31: #{tpu_custom_call.1} parent=23 // pred_region
          %s878 = ssub.s32 16, 16
          %879 = vsyncadd %s871, %s878
          %s880 = smul.addr %s18, 16
          %s881 = scalar_lea.hbm %s1, %s880
          %s883 = sshll.u32 %s873, 4
          %s884 = int_to_ptr.vmem [resolvable:$true] %s883
          %886 = dma.vmem_to_hbm [thread:$0]  %s884, 16, %s881, %s871
        $region32: #{tpu_custom_call.1} parent=23 // pred_fallthru
          _
      $region24: #{tpu_custom_call.1} parent=5 // pred_fallthru
        _
      %p887 = scmp.le.s32.totalorder 2, %s13
      // Predicated region
      $region33: #{tpu_custom_call.1} parent=5 // pred_check
        %p888 = pneg %p887
      $region34: #{tpu_custom_call.1} parent=5 // pred_check_branch
        %890 = sbr.rel (%p888) target = $region36
      $region35: #{tpu_custom_call.1} parent=5 // pred_region
        %s891 = ssub.s32 %s13, 2
        // Predicated region
        $region37: #{tpu_custom_call.1} parent=35 // pred_check
          %p892 = pneg %p68
        $region38: #{tpu_custom_call.1} parent=35 // pred_check_branch
          %894 = sbr.rel (%p892) target = $region40
        $region39: #{tpu_custom_call.1} parent=35 // pred_region
          %s895 = sand.u32 %s53, 1
          %s896 = scalar_lea.sflag [#allocation4], %s895
          %s897 = sand.u32 %s53, 1
          %s898 = scalar_lea.vmem [#allocation5], %s897
          %899 = dma.done %s896, 16
        $region40: #{tpu_custom_call.1} parent=35 // pred_fallthru
          _
      $region36: #{tpu_custom_call.1} parent=5 // pred_fallthru
        _
    $region6: #{tpu_custom_call.1} parent=1 // loop_footer
      %s17 = sadd.s32 1, %s13
    $region7: #{tpu_custom_call.1} parent=1 // loop_footer_branch
      %12 = sbr.rel target = $region3
    $region8: #{tpu_custom_call.1} parent=1 // loop_exit
      _
    %900 = vsyncpa [#allocation3], 1
    %s901 = scalar_lea.sflag [#allocation3], 1
    %902 = vsyncpa %s901, 1
    %903 = vsyncpa [#allocation4], 1
    %s904 = scalar_lea.sflag [#allocation4], 1
    %905 = vsyncpa %s904, 1

</llo_original>
